<compile_context>
chip_gen: v7x
topology: tpu7x:2x2x1
jax: 0.10.0
libtpu: 0.0.40
codegen_flags: <defaults>
</compile_context>

<pallas_src>
import math
import functools

import jax
import jax.numpy as jnp
from jax.experimental import pallas as pl
from jax.experimental.pallas import tpu as pltpu


def _loss_kernel(pred_ref, true_ref, inv_dr_ref, out_ref, *,
                 range_max, inv_n, pattern_only):
    """One grid step: Bt batches -> per-feature partial sum of squared diffs.

    pred_ref/true_ref: (Bt, N, D) native dtype, cast to f32 after load.
    inv_dr_ref:        (1, D) precomputed range_max / clamp(data_range, eps)
                       (only read when pattern_only=False).
    out_ref:           (1, 1, D) lane-dense per-block partial sums.
    """
    eps = jnp.float32(1e-4)
    rm = jnp.float32(range_max)
    inv_sqrt_rm = jnp.float32(1.0 / math.sqrt(range_max))

    pred = pred_ref[...].astype(jnp.float32)   # (Bt, N, D)
    true = true_ref[...].astype(jnp.float32)

    def map_fn(x):
        x_min = jnp.min(x, axis=1, keepdims=True)              # (Bt, 1, D)
        if pattern_only:
            x_max = jnp.max(x, axis=1, keepdims=True)          # (Bt, 1, D)
            # Bt*D divides instead of Bt*N*D elementwise divides.
            inv_scale = rm / jnp.maximum(x_max - x_min, eps)   # (Bt, 1, D)
        else:
            # Hoisted to wrapper: range_max / clamp(data_range, eps).
            inv_scale = inv_dr_ref[...].reshape(1, 1, -1)      # (1, 1, D)
        normalized = jnp.maximum((x - x_min) * inv_scale, eps)
        return jnp.power(normalized, jnp.float32(inv_n)) * inv_sqrt_rm

    diff = map_fn(pred) - map_fn(true)
    # Partial per-feature reduction only (no cross-lane reduce-to-scalar,
    # no resident accumulator -> grid stays parallel).
    out_ref[...] = jnp.sum(diff * diff, axis=(0, 1), keepdims=True)


def exponential_smooth_l2_loss(pred, true, shape, data_range, *,
                               n=3, range_max=100, pattern_only=False):
    """Equivalent of ExponentialSmoothL2Loss(n, range_max, data_range).forward."""
    B, N, _ = shape
    pred = pred.reshape(B, N, -1)
    true = true.reshape(B, N, -1)
    D = pred.shape[-1]

    dr = jnp.asarray(data_range, jnp.float32).reshape(-1)
    assert dr.shape[0] == D, (
        f"data_range length {dr.shape[0]} does not match inferred D={D}")
    eps = jnp.float32(1e-4)
    # Precompute the (range_max / scale) row once; kernel only multiplies.
    inv_dr = (jnp.float32(range_max) / jnp.maximum(dr, eps)).reshape(1, D)

    # Choose batches-per-block: largest divisor of B whose input tile stays
    # around a few MiB (2 inputs x 2 pipeline buffers stays well under the
    # scoped-VMEM default on v5e/v6e/v7x).
    bytes_per_batch = N * D * pred.dtype.itemsize
    target_tile_bytes = 4 * 1024 * 1024
    bt = 1
    for cand in range(1, B + 1):
        if B % cand == 0 and cand * bytes_per_batch <= target_tile_bytes:
            bt = cand
    grid_b = B // bt

    kernel = functools.partial(
        _loss_kernel,
        range_max=float(range_max),
        inv_n=1.0 / float(n),
        pattern_only=pattern_only,
    )

    partial_sums = pl.pallas_call(
        kernel,
        out_shape=jax.ShapeDtypeStruct((grid_b, 1, D), jnp.float32),
        grid=(grid_b,),
        in_specs=[
            pl.BlockSpec((bt, N, D), lambda g: (g, 0, 0)),
            pl.BlockSpec((bt, N, D), lambda g: (g, 0, 0)),
            pl.BlockSpec((1, D), lambda g: (0, 0)),
        ],
        out_specs=pl.BlockSpec((1, 1, D), lambda g: (g, 0, 0)),
        compiler_params=pltpu.CompilerParams(
            dimension_semantics=("parallel",)),
    )(pred, true, inv_dr)

    return jnp.sum(partial_sums) / jnp.float32(B * N * D)


def _ref_loss(pred, true, shape, data_range, *,
              n=3, range_max=100, pattern_only=False):
    B, N, _ = shape
    pred = pred.reshape(B, N, -1).astype(jnp.float32)
    true = true.reshape(B, N, -1).astype(jnp.float32)
    dr = jnp.asarray(data_range, jnp.float32).reshape(1, 1, -1)
    eps = 1e-4

    def mp(x):
        x_min = x.min(axis=1, keepdims=True)
        if pattern_only:
            x_max = x.max(axis=1, keepdims=True)
            scale = jnp.maximum(x_max - x_min, eps)
        else:
            scale = jnp.maximum(dr, eps)
        norm = (x - x_min) / scale
        norm = jnp.maximum(norm * range_max, eps)
        return jnp.power(norm, 1.0 / n) / math.sqrt(range_max)

    return jnp.mean((mp(pred) - mp(true)) ** 2)


if __name__ == "__main__":
    B, N, D = 2, 8, 32
    key = jax.random.PRNGKey(0)
    k1, k2, k3 = jax.random.split(key, 3)

    pred = jax.random.normal(k1, (B, N, D), dtype=jnp.float32)
    true = jax.random.normal(k2, (B, N, D), dtype=jnp.float32)
    # deterministic positive "data_range" parameter of shape (D,)
    data_range = jax.random.uniform(k3, (D,), dtype=jnp.float32,
                                    minval=0.5, maxval=2.0)

    ok = True
    for pattern_only in (False, True):
        got = exponential_smooth_l2_loss(
            pred, true, (B, N, D), data_range,
            n=3, range_max=100, pattern_only=pattern_only)
        got = jax.block_until_ready(got)
        want = _ref_loss(pred, true, (B, N, D), data_range,
                         n=3, range_max=100, pattern_only=pattern_only)
        if not jnp.allclose(got, want, rtol=1e-5, atol=1e-6):
            ok = False
            print(f"MISMATCH pattern_only={pattern_only}: {got} vs {want}")

    if ok:
        print("KERNEL_OK")
</pallas_src>

<mosaic_0001>
module attributes {stable_mosaic.version = 11 : i64} {
  func.func @_loss_kernel(%arg0: i32, %arg1: memref<2x8x32xf32, #tpu.memory_space<vmem>>, %arg2: memref<2x8x32xf32, #tpu.memory_space<vmem>>, %arg3: memref<1x32xf32, #tpu.memory_space<vmem>>, %arg4: memref<1x1x32xf32, #tpu.memory_space<vmem>>) attributes {dimension_semantics = [#tpu.dimension_semantics<parallel>], iteration_bounds = array<i64: 1>, scalar_prefetch = 0 : i64, scratch_operands = 0 : i64, tpu.core_type = #tpu.core_type<tc>, window_params = [{transform_indices = @transform_0, window_bounds = array<i64: 2, 8, 32>}, {transform_indices = @transform_1, window_bounds = array<i64: 2, 8, 32>}, {pipeline_mode = #tpu.pipeline_mode<synchronous>, transform_indices = @transform_2, window_bounds = array<i64: 1, 32>}, {transform_indices = @transform_3, window_bounds = array<i64: 1, 1, 32>}]} {
    %c0 = arith.constant 0 : index
    %c0_0 = arith.constant 0 : index
    %c0_1 = arith.constant 0 : index
    %0 = vector.load %arg1[%c0, %c0_0, %c0_1] : memref<2x8x32xf32, #tpu.memory_space<vmem>>, vector<2x8x32xf32>
    %c0_2 = arith.constant 0 : index
    %c0_3 = arith.constant 0 : index
    %c0_4 = arith.constant 0 : index
    %1 = vector.load %arg2[%c0_2, %c0_3, %c0_4] : memref<2x8x32xf32, #tpu.memory_space<vmem>>, vector<2x8x32xf32>
    %cst = arith.constant dense<0x7F800000> : vector<2x32xf32>
    %2 = vector.multi_reduction <minimumf>, %0, %cst [1] : vector<2x8x32xf32> to vector<2x32xf32>
    %3 = vector.shape_cast %2 : vector<2x32xf32> to vector<2x1x32xf32>
    %c0_5 = arith.constant 0 : index
    %c0_6 = arith.constant 0 : index
    %4 = vector.load %arg3[%c0_5, %c0_6] : memref<1x32xf32, #tpu.memory_space<vmem>>, vector<1x32xf32>
    %5 = vector.shape_cast %4 : vector<1x32xf32> to vector<1x1x32xf32>
    %6 = vector.broadcast %3 : vector<2x1x32xf32> to vector<2x8x32xf32>
    %7 = arith.subf %0, %6 : vector<2x8x32xf32>
    %8 = vector.broadcast %5 : vector<1x1x32xf32> to vector<2x8x32xf32>
    %9 = arith.mulf %7, %8 : vector<2x8x32xf32>
    %cst_7 = arith.constant 9.99999974E-5 : f32
    %10 = vector.broadcast %cst_7 : f32 to vector<2x8x32xf32>
    %11 = arith.maximumf %9, %10 : vector<2x8x32xf32>
    %cst_8 = arith.constant 0.333333343 : f32
    %12 = vector.broadcast %cst_8 : f32 to vector<2x8x32xf32>
    %13 = math.powf %11, %12 : vector<2x8x32xf32>
    %cst_9 = arith.constant 1.000000e-01 : f32
    %14 = vector.broadcast %cst_9 : f32 to vector<2x8x32xf32>
    %15 = arith.mulf %13, %14 : vector<2x8x32xf32>
    %cst_10 = arith.constant dense<0x7F800000> : vector<2x32xf32>
    %16 = vector.multi_reduction <minimumf>, %1, %cst_10 [1] : vector<2x8x32xf32> to vector<2x32xf32>
    %17 = vector.shape_cast %16 : vector<2x32xf32> to vector<2x1x32xf32>
    %c0_11 = arith.constant 0 : index
    %c0_12 = arith.constant 0 : index
    %18 = vector.load %arg3[%c0_11, %c0_12] : memref<1x32xf32, #tpu.memory_space<vmem>>, vector<1x32xf32>
    %19 = vector.shape_cast %18 : vector<1x32xf32> to vector<1x1x32xf32>
    %20 = vector.broadcast %17 : vector<2x1x32xf32> to vector<2x8x32xf32>
    %21 = arith.subf %1, %20 : vector<2x8x32xf32>
    %22 = vector.broadcast %19 : vector<1x1x32xf32> to vector<2x8x32xf32>
    %23 = arith.mulf %21, %22 : vector<2x8x32xf32>
    %cst_13 = arith.constant 9.99999974E-5 : f32
    %24 = vector.broadcast %cst_13 : f32 to vector<2x8x32xf32>
    %25 = arith.maximumf %23, %24 : vector<2x8x32xf32>
    %cst_14 = arith.constant 0.333333343 : f32
    %26 = vector.broadcast %cst_14 : f32 to vector<2x8x32xf32>
    %27 = math.powf %25, %26 : vector<2x8x32xf32>
    %cst_15 = arith.constant 1.000000e-01 : f32
    %28 = vector.broadcast %cst_15 : f32 to vector<2x8x32xf32>
    %29 = arith.mulf %27, %28 : vector<2x8x32xf32>
    %30 = arith.subf %15, %29 : vector<2x8x32xf32>
    %31 = arith.mulf %30, %30 : vector<2x8x32xf32>
    %cst_16 = arith.constant dense<0.000000e+00> : vector<32xf32>
    %32 = vector.multi_reduction <add>, %31, %cst_16 [0, 1] : vector<2x8x32xf32> to vector<32xf32>
    %33 = vector.shape_cast %32 : vector<32xf32> to vector<1x1x32xf32>
    %c0_17 = arith.constant 0 : index
    %c0_18 = arith.constant 0 : index
    %c0_19 = arith.constant 0 : index
    %34 = vector.load %arg4[%c0_17, %c0_18, %c0_19] : memref<1x1x32xf32, #tpu.memory_space<vmem>>, vector<1x1x32xf32>
    tpu.vector_store %arg4[%c0_17, %c0_18, %c0_19], %33 {strides = array<i32>} : memref<1x1x32xf32, #tpu.memory_space<vmem>>, vector<1x1x32xf32>,
    return
  }
  func.func @transform_0(%arg0: i32) -> (i32, i32, i32) {
    %c0_i32 = arith.constant 0 : i32
    %c0_i32_0 = arith.constant 0 : i32
    %c0_i32_1 = arith.constant 0 : i32
    return %arg0, %c0_i32, %c0_i32_0 : i32, i32, i32
  }
  func.func @transform_1(%arg0: i32) -> (i32, i32, i32) {
    %c0_i32 = arith.constant 0 : i32
    %c0_i32_0 = arith.constant 0 : i32
    %c0_i32_1 = arith.constant 0 : i32
    return %arg0, %c0_i32, %c0_i32_0 : i32, i32, i32
  }
  func.func @transform_2(%arg0: i32) -> (i32, i32) {
    %c0_i32 = arith.constant 0 : i32
    %c0_i32_0 = arith.constant 0 : i32
    %c0_i32_1 = arith.constant 0 : i32
    return %c0_i32, %c0_i32_0 : i32, i32
  }
  func.func @transform_3(%arg0: i32) -> (i32, i32, i32) {
    %c0_i32 = arith.constant 0 : i32
    %c0_i32_0 = arith.constant 0 : i32
    %c0_i32_1 = arith.constant 0 : i32
    return %arg0, %c0_i32, %c0_i32_0 : i32, i32, i32
  }
}

</mosaic_0001>

<llo_original>
// kernel: tpu_custom_call.1
$region0: #{tpu_custom_call.1}
  #allocation0 [shape = 'u32[]', space=smem, size = 0x4, offset = 0x4, fixed_abs, tag = 'smem constant byte address 0x4 - core index']
  #allocation1 [shape = 'u32[144,128]{1,0:T(1,128)}', space=vmem, size = 0x12000, scoped, tag = 'internal scratch']
  %s0 = inlined_call_operand.hbm [shape: f32[2,8,32], index: 0, kind: input, shape index: {}]
  %s1 = inlined_call_operand.hbm [shape: f32[2,8,32], index: 1, kind: input, shape index: {}]
  %s2 = inlined_call_operand.vmem [shape: f32[1,32], index: 2, kind: input, shape index: {}]
  %s3 = inlined_call_operand.hbm [shape: f32[1,1,32], index: 3, kind: output, shape index: {}]
  %s4 = sld [smem:[#allocation0]]
  $region30: #{tpu_custom_call.1} parent=0
    _
  %s6 = ssub.s32 1, %s4
  %s7 = scalar_select 0, %s6, %s4
  $region1: #{tpu_custom_call.1} parent=0
    #allocation2 [shape = 'u8[8192]{0}', space=vmem, size = 0x2000, scoped, tag = 'input window, operand 0, single buffered']
    #allocation3 [shape = 's32[1]{0}', space=sflag, size = 0x4, scoped, tag = 'scoped memory for tpu_custom_call.1']
    #allocation4 [shape = 's32[1]{0}', space=sflag, size = 0x4, scoped, tag = 'scoped memory for tpu_custom_call.1']
    #allocation5 [shape = 'u8[8192]{0}', space=vmem, size = 0x2000, scoped, tag = 'input window, operand 1, single buffered']
    #allocation6 [shape = 's32[1]{0}', space=sflag, size = 0x4, scoped, tag = 'scoped memory for tpu_custom_call.1']
    #allocation7 [shape = 'u8[512]{0}', space=vmem, size = 0x400, scoped, tag = 'output window, operand 0, single buffered']
    %8 = vsyncpa [#allocation3], 0
    %9 = vsyncpa [#allocation6], 0
    %10 = vsyncpa [#allocation4], 0
    // Predicated region
    $region2: #{tpu_custom_call.1} parent=1 // pred_check
      _
    $region3: #{tpu_custom_call.1} parent=1 // pred_check_branch
      %12 = sbr.rel (0) target = $region5
    $region4: #{tpu_custom_call.1} parent=1 // pred_region
      %s14 = ssub.s32 256, 256
      %15 = vsyncadd [#allocation3], %s14
      %s16 = sshll.u32 [#allocation2], 4
      %s17 = int_to_ptr.vmem [resolvable:$true] %s16
      %22 = dma.hbm_to_vmem [thread:$0]  %s0, 256, %s17, [#allocation3], 128, 128, 8
    $region5: #{tpu_custom_call.1} parent=1 // pred_fallthru
      _
    // Predicated region
    $region6: #{tpu_custom_call.1} parent=1 // pred_check
      _
    $region7: #{tpu_custom_call.1} parent=1 // pred_check_branch
      %24 = sbr.rel (0) target = $region9
    $region8: #{tpu_custom_call.1} parent=1 // pred_region
      %s26 = ssub.s32 256, 256
      %27 = vsyncadd [#allocation6], %s26
      %s28 = sshll.u32 [#allocation5], 4
      %s29 = int_to_ptr.vmem [resolvable:$true] %s28
      %34 = dma.hbm_to_vmem [thread:$0]  %s1, 256, %s29, [#allocation6], 128, 128, 8
    $region9: #{tpu_custom_call.1} parent=1 // pred_fallthru
      _
    // Predicated region
    $region10: #{tpu_custom_call.1} parent=1 // pred_check
      _
    $region11: #{tpu_custom_call.1} parent=1 // pred_check_branch
      %36 = sbr.rel (0) target = $region13
    $region12: #{tpu_custom_call.1} parent=1 // pred_region
      _
    $region13: #{tpu_custom_call.1} parent=1 // pred_fallthru
      _
    // Predicated region
    $region14: #{tpu_custom_call.1} parent=1 // pred_check
      _
    $region15: #{tpu_custom_call.1} parent=1 // pred_check_branch
      %38 = sbr.rel (0) target = $region17
    $region16: #{tpu_custom_call.1} parent=1 // pred_region
      %39 = dma.done [#allocation3], 256
    $region17: #{tpu_custom_call.1} parent=1 // pred_fallthru
      _
    // Predicated region
    $region18: #{tpu_custom_call.1} parent=1 // pred_check
      _
    $region19: #{tpu_custom_call.1} parent=1 // pred_check_branch
      %41 = sbr.rel (0) target = $region21
    $region20: #{tpu_custom_call.1} parent=1 // pred_region
      %42 = dma.done [#allocation6], 256
    $region21: #{tpu_custom_call.1} parent=1 // pred_fallthru
      _
    %v43 = vld [vmem:[#allocation2] sm:$0xff]
    %v44 = vld [vmem:[#allocation2 + $0x8] sm:$0xff]
    %v45 = vld [vmem:[#allocation5] sm:$0xff]
    %v46 = vld [vmem:[#allocation5 + $0x8] sm:$0xff]
    %vm47 = vcmask 261120
    %v48 = vsel %vm47, %v43, inf
    %v49 = vrot.slane %v48, 4
    %v50 = vmin.f32 %v48, %v49
    %v51 = vrot.slane %v50, 2
    %v52 = vmin.f32 %v50, %v51
    %v53 = vrot.slane %v52, 1
    %v54 = vmin.f32 %v52, %v53
    %v55 = vsel %vm47, %v44, inf
    %v56 = vrot.slane %v55, 4
    %v57 = vmin.f32 %v55, %v56
    %v58 = vrot.slane %v57, 2
    %v59 = vmin.f32 %v57, %v58
    %v60 = vrot.slane %v59, 1
    %v61 = vmin.f32 %v59, %v60
    %v62 = vld [vmem:[%s2] sm:$0x1]
    %v63 = vsub.f32 %v43, %v54
    %v64 = vsub.f32 %v44, %v61
    %v66 = vlaneseq
    %v67 = vshrl.u32 %v66, 7
    %v68 = vsub.s32 0, %v67
    %v69 = vrot.slane %v62, %v68
    %v71 = vmul.f32 %v63, %v69
    %v72 = vmul.f32 %v64, %v69
    %v73 = vmax.f32 %v71, 0.0001
    %v74 = vmax.f32 %v72, 0.0001
    %v75 = vpow.f32 %v73, 0.33333334
    %v76 = vpow.f32 %v74, 0.33333334
    %v77 = vmul.f32 %v75, 0.1
    %v78 = vmul.f32 %v76, 0.1
    %v79 = vsel %vm47, %v45, inf
    %v80 = vrot.slane %v79, 4
    %v81 = vmin.f32 %v79, %v80
    %v82 = vrot.slane %v81, 2
    %v83 = vmin.f32 %v81, %v82
    %v84 = vrot.slane %v83, 1
    %v85 = vmin.f32 %v83, %v84
    %v86 = vsel %vm47, %v46, inf
    %v87 = vrot.slane %v86, 4
    %v88 = vmin.f32 %v86, %v87
    %v89 = vrot.slane %v88, 2
    %v90 = vmin.f32 %v88, %v89
    %v91 = vrot.slane %v90, 1
    %v92 = vmin.f32 %v90, %v91
    %v93 = vsub.f32 %v45, %v85
    %v94 = vsub.f32 %v46, %v92
    %v95 = vmul.f32 %v93, %v69
    %v96 = vmul.f32 %v94, %v69
    %v97 = vmax.f32 %v95, 0.0001
    %v98 = vmax.f32 %v96, 0.0001
    %v99 = vpow.f32 %v97, 0.33333334
    %v100 = vpow.f32 %v98, 0.33333334
    %v101 = vmul.f32 %v99, 0.1
    %v102 = vmul.f32 %v100, 0.1
    %v103 = vsub.f32 %v77, %v101
    %v104 = vsub.f32 %v78, %v102
    %v105 = vmul.f32 %v103, %v103
    %v106 = vmul.f32 %v104, %v104
    %v107 = vsel %vm47, %v105, 0.0
    %v108 = vsel %vm47, %v106, 0.0
    %v109 = vadd.f32 %v107, %v108
    %v110 = vrot.slane %v109, 4
    %v111 = vadd.f32 %v109, %v110
    %v112 = vrot.slane %v111, 2
    %v113 = vadd.f32 %v111, %v112
    %v114 = vrot.slane %v113, 1
    %v115 = vadd.f32 %v113, %v114
    %vm116 = vcmask 253952
    %117 = vst.msk [vmem:[#allocation7] sm:$0x1] %vm116, %v115
    // Predicated region
    $region22: #{tpu_custom_call.1} parent=1 // pred_check
      _
    $region23: #{tpu_custom_call.1} parent=1 // pred_check_branch
      %119 = sbr.rel (0) target = $region25
    $region24: #{tpu_custom_call.1} parent=1 // pred_region
      %s121 = ssub.s32 16, 16
      %122 = vsyncadd [#allocation4], %s121
      %s124 = sshll.u32 [#allocation7], 4
      %s125 = int_to_ptr.vmem [resolvable:$true] %s124
      %127 = dma.vmem_to_hbm [thread:$0]  %s125, 16, %s3, [#allocation4]
    $region25: #{tpu_custom_call.1} parent=1 // pred_fallthru
      _
    // Predicated region
    $region26: #{tpu_custom_call.1} parent=1 // pred_check
      _
    $region27: #{tpu_custom_call.1} parent=1 // pred_check_branch
      %129 = sbr.rel (0) target = $region29
    $region28: #{tpu_custom_call.1} parent=1 // pred_region
      %130 = dma.done [#allocation4], 16
    $region29: #{tpu_custom_call.1} parent=1 // pred_fallthru
      _
    %131 = vsyncpa [#allocation3], 1
    %132 = vsyncpa [#allocation6], 1
    %133 = vsyncpa [#allocation4], 1

</llo_original>
